<compile_context>
chip_gen: v5e
topology: v5e:2x2
jax: 0.10.0
libtpu: 0.0.40
codegen_flags: <defaults>
</compile_context>

<pallas_src>
import jax
import jax.numpy as jnp
from jax.experimental import pallas as pl
from jax.experimental.pallas import tpu as pltpu

EPS = 1e-5  # nn.LayerNorm default


def _round_up(x, m):
    return ((x + m - 1) // m) * m


def _vmem_budget_bytes():
    """~85% of this chip's per-core VMEM; conservative 64 MiB (v7x) fallback."""
    cap = 64 * 2**20
    try:
        info = pltpu.get_tpu_info()
        cap = int(getattr(info, "vmem_capacity_bytes", cap)) or cap
    except Exception:
        pass
    return int(cap * 0.85)


def _largest_aligned_divisor(d, align=128, cap=512):
    """Largest divisor of d that is a multiple of `align` and <= cap (or None)."""
    for t in range(min(cap, d), 0, -1):
        if d % t == 0 and t % align == 0:
            return t
    return None


def _make_kernel(rows, tm, needs_mask):
    def prenorm_kernel(x_ref, gamma_ref, beta_ref, w_ref, b_ref, o_ref, y_ref):
        """One (row-tile i, N-tile j) grid step.

        x_ref:      (TM, D)   input rows (input dtype)
        gamma/beta: (1, D)    LayerNorm affine params
        w_ref:      (D, TN)   weight tile (compute dtype; bf16 fast path)
        b_ref:      (1, TN)   bias tile
        o_ref:      (TM, TN)  output tile
        y_ref:      (TM, D)   VMEM scratch: LayerNorm(x) for this row tile,
                              computed once at j == 0, reused for all N tiles.
        """
        j = pl.program_id(1)

        @pl.when(j == 0)
        def _():
            # LayerNorm statistics always in f32 on the VPU.
            # PyTorch semantics: biased variance, eps inside rsqrt.
            x = x_ref[...].astype(jnp.float32)
            mean = jnp.mean(x, axis=-1, keepdims=True)
            centered = x - mean
            var = jnp.mean(centered * centered, axis=-1, keepdims=True)
            y = centered * jax.lax.rsqrt(var + EPS)
            y = y * gamma_ref[...].astype(jnp.float32) \
                + beta_ref[...].astype(jnp.float32)
            if needs_mask:
                # Ragged tail: rows beyond the logical row count read garbage
                # from the partial block; zero them (their output writes are
                # masked by Pallas anyway, this just keeps values finite).
                i = pl.program_id(0)
                row_ids = jax.lax.broadcasted_iota(jnp.int32, y.shape, 0) + i * tm
                y = jnp.where(row_ids < rows, y, 0.0)
            y_ref[...] = y.astype(y_ref.dtype)

        # fn(norm(x)) : fn = Linear(D, D) on the MXU, f32 accumulation.
        out = jnp.dot(y_ref[...], w_ref[...], preferred_element_type=jnp.float32)
        out = out + b_ref[...].astype(jnp.float32)
        o_ref[...] = out.astype(o_ref.dtype)

    return prenorm_kernel


def prenorm(x, gamma, beta, w, b, *, compute_dtype=None, block_rows=1024):
    """x: (B, S, D) -> Linear(LayerNorm(x)).

    w: (D, D) applied as y @ w (transpose of nn.Linear's stored (out, in)
    layout), b: (D,).  LayerNorm stats and the matmul accumulation are always
    f32; matmul *operands* run in `compute_dtype` (default bf16 -> MXU fast
    path on v5e/v6e/v7x; pass jnp.float32 for a bit-strict f32 path).
    """
    B, S, D = x.shape
    rows = B * S

    if compute_dtype is None:
        # bf16 operands by default: v6e/v7x MXUs are bf16-native and this also
        # halves the weight + y-scratch VMEM/HBM footprint.
        compute_dtype = jnp.bfloat16 if x.dtype in (jnp.bfloat16, jnp.float32) \
            else x.dtype

    x_b = jnp.dtype(x.dtype).itemsize
    w_b = jnp.dtype(compute_dtype).itemsize
    o_b = jnp.dtype(x.dtype).itemsize
    y_b = w_b
    param_bytes = 4 * 4 * D  # gamma, beta, bias (+slack), ~f32

    budget = _vmem_budget_bytes()

    def vmem_need(tm_, tn_):
        # Pallas double-buffers every BlockSpec'd operand (even constant-index
        # ones); the y scratch is a single buffer.
        return (2 * tm_ * D * x_b          # x tile
                + 2 * D * tn_ * w_b        # w tile
                + 2 * tm_ * tn_ * o_b      # out tile
                + tm_ * D * y_b            # y scratch
                + 2 * param_bytes)         # gamma/beta/bias

    # --- row (M) tiling ------------------------------------------------------
    # bf16 packs 16 sublanes per vreg -> 16-align row tiles on any bf16 path.
    align = 16 if (x.dtype == jnp.bfloat16 or compute_dtype == jnp.bfloat16) else 8
    tm_max = min(_round_up(block_rows, align), _round_up(rows, align))
    if rows >= 2 * align:
        # Guarantee num_m >= 2 so the "parallel" row axis can feed both
        # TensorCores on v7x megacore.
        tm_max = min(tm_max, _round_up(-(-rows // 2), align))
    tm = tm_max

    # --- weight residency / N tiling ----------------------------------------
    # Prefer a fully-resident weight: with tn = D its block index is constant,
    # so it is DMA'd from HBM exactly once instead of num_m times.
    while tm > align and vmem_need(tm, D) > budget:
        tm = max(align, _round_up(tm // 2, align))
    if vmem_need(tm, D) <= budget:
        tn = D
    else:
        # Weight cannot be resident: stream it in lane-dense N tiles, and keep
        # tm as large as possible so num_m (= number of full-weight refetches)
        # stays small.
        tn = _largest_aligned_divisor(D, align=128, cap=512) or D
        tm = tm_max
        while tm > align and vmem_need(tm, tn) > budget:
            tm = max(align, _round_up(tm // 2, align))

    num_m = pl.cdiv(rows, tm)
    num_n = D // tn
    needs_mask = (rows % tm) != 0

    x2d = x.reshape(rows, D)
    gamma2d = gamma.reshape(1, D)
    beta2d = beta.reshape(1, D)
    w_c = w.astype(compute_dtype)  # halve weight DMA bytes on the bf16 path
    b2d = b.reshape(1, D)

    need = vmem_need(tm, tn)
    vmem_limit = int(min(max(int(1.3 * need), 32 * 2**20), budget))

    # Advisory cost: weight bytes reflect streaming (num_m refetches) when the
    # weight is not resident.
    w_traffic = (num_m if num_n > 1 else 1) * D * D * w_b
    cost = pl.CostEstimate(
        flops=2 * rows * D * D,
        bytes_accessed=rows * D * x_b + w_traffic + rows * D * o_b + 3 * D * 4,
        transcendentals=rows,  # one rsqrt per row
    )

    kernel = _make_kernel(rows, tm, needs_mask)

    out2d = pl.pallas_call(
        kernel,
        out_shape=jax.ShapeDtypeStruct((rows, D), x.dtype),
        grid=(num_m, num_n),
        in_specs=[
            # x block index is constant over j -> re-DMA'd only when i changes.
            pl.BlockSpec((tm, D), lambda i, j: (i, 0)),
            pl.BlockSpec((1, D), lambda i, j: (0, 0)),    # gamma
            pl.BlockSpec((1, D), lambda i, j: (0, 0)),    # beta
            pl.BlockSpec((D, tn), lambda i, j: (0, j)),   # w (resident if tn==D)
            pl.BlockSpec((1, tn), lambda i, j: (0, j)),   # bias
        ],
        out_specs=pl.BlockSpec((tm, tn), lambda i, j: (i, j)),
        scratch_shapes=[pltpu.VMEM((tm, D), compute_dtype)],
        compiler_params=pltpu.CompilerParams(
            # Rows are independent -> "parallel" (megacore sharding on v7x);
            # the N axis must stay innermost/sequential ("arbitrary") because
            # it reuses the y scratch computed at j == 0.
            dimension_semantics=("parallel", "arbitrary"),
            vmem_limit_bytes=vmem_limit,
        ),
        cost_estimate=cost,
    )(x2d, gamma2d, beta2d, w_c, b2d)

    return out2d.reshape(B, S, D)


if __name__ == "__main__":
    B, S, D = 2, 8, 32
    key = jax.random.PRNGKey(0)
    kx, kw, kb = jax.random.split(key, 3)

    x = jax.random.normal(kx, (B, S, D), dtype=jnp.float32)

    # nn.LayerNorm(dim) init: weight = 1, bias = 0
    gamma = jnp.ones((D,), dtype=jnp.float32)
    beta = jnp.zeros((D,), dtype=jnp.float32)

    # fn = Linear(D, D), deterministic synthetic init
    w = jax.random.normal(kw, (D, D), dtype=jnp.float32) * 0.02
    b = jax.random.normal(kb, (D,), dtype=jnp.float32) * 0.02

    def ref_fn(xv):
        xv = xv.astype(jnp.float32)
        mean = jnp.mean(xv, axis=-1, keepdims=True)
        var = jnp.mean((xv - mean) ** 2, axis=-1, keepdims=True)
        y = ((xv - mean) / jnp.sqrt(var + EPS)) * gamma + beta
        return jnp.einsum("bsd,de->bse", y, w) + b

    ref = ref_fn(x)

    # Strict f32 path: tight tolerance vs pure-JAX reference.
    out_f32 = prenorm(x, gamma, beta, w, b, compute_dtype=jnp.float32)
    jax.block_until_ready(out_f32)
    assert jnp.allclose(out_f32, ref, atol=1e-4, rtol=1e-4), "f32 mismatch vs reference"

    # Default path: f32 LN stats + f32 accumulation, bf16 MXU operands.
    out_def = prenorm(x, gamma, beta, w, b)
    jax.block_until_ready(out_def)
    assert jnp.allclose(out_def, ref, atol=5e-2, rtol=5e-2), \
        "bf16-operand default path mismatch vs reference"

    # bf16 input path.
    x_bf16 = x.astype(jnp.bfloat16)
    out_bf = prenorm(x_bf16, gamma, beta, w, b)
    jax.block_until_ready(out_bf)
    ref_bf = ref_fn(x_bf16)
    assert jnp.allclose(out_bf.astype(jnp.float32), ref_bf,
                        atol=5e-2, rtol=5e-2), "bf16 mismatch vs reference"

    print("KERNEL_OK")
</pallas_src>

<mosaic_0001>
module attributes {stable_mosaic.version = 11 : i64} {
  func.func @prenorm_kernel(%arg0: i32, %arg1: i32, %arg2: memref<8x32xf32, #tpu.memory_space<vmem>>, %arg3: memref<1x32xf32, #tpu.memory_space<vmem>>, %arg4: memref<1x32xf32, #tpu.memory_space<vmem>>, %arg5: memref<32x32xf32, #tpu.memory_space<vmem>>, %arg6: memref<1x32xf32, #tpu.memory_space<vmem>>, %arg7: memref<8x32xf32, #tpu.memory_space<vmem>>, %arg8: memref<8x32xf32, #tpu.memory_space<vmem>>) attributes {dimension_semantics = [#tpu.dimension_semantics<parallel>, #tpu.dimension_semantics<arbitrary>], iteration_bounds = array<i64: 2, 1>, scalar_prefetch = 0 : i64, scratch_operands = 1 : i64, tpu.core_type = #tpu.core_type<tc>, window_params = [{transform_indices = @transform_0, window_bounds = array<i64: 8, 32>}, {pipeline_mode = #tpu.pipeline_mode<synchronous>, transform_indices = @transform_1, window_bounds = array<i64: 1, 32>}, {pipeline_mode = #tpu.pipeline_mode<synchronous>, transform_indices = @transform_2, window_bounds = array<i64: 1, 32>}, {transform_indices = @transform_3, window_bounds = array<i64: 32, 32>}, {transform_indices = @transform_4, window_bounds = array<i64: 1, 32>}, {transform_indices = @transform_5, window_bounds = array<i64: 8, 32>}]} {
    %c0_i32 = arith.constant 0 : i32
    %0 = arith.cmpi eq, %arg1, %c0_i32 : i32
    %1 = arith.extui %0 : i1 to i32
    %c0_i32_0 = arith.constant 0 : i32
    %2 = arith.cmpi ne, %1, %c0_i32_0 : i32
    scf.if %2 {
      %c0_8 = arith.constant 0 : index
      %c0_9 = arith.constant 0 : index
      %10 = vector.load %arg2[%c0_8, %c0_9] : memref<8x32xf32, #tpu.memory_space<vmem>>, vector<8x32xf32>
      %cst_10 = arith.constant dense<0.000000e+00> : vector<8xf32>
      %11 = vector.multi_reduction <add>, %10, %cst_10 [1] : vector<8x32xf32> to vector<8xf32>
      %12 = vector.shape_cast %11 : vector<8xf32> to vector<8x1xf32>
      %cst_11 = arith.constant 3.200000e+01 : f32
      %13 = vector.broadcast %cst_11 : f32 to vector<8x1xf32>
      %14 = arith.divf %12, %13 : vector<8x1xf32>
      %15 = vector.broadcast %14 : vector<8x1xf32> to vector<8x32xf32>
      %16 = arith.subf %10, %15 : vector<8x32xf32>
      %17 = arith.mulf %16, %16 : vector<8x32xf32>
      %cst_12 = arith.constant dense<0.000000e+00> : vector<8xf32>
      %18 = vector.multi_reduction <add>, %17, %cst_12 [1] : vector<8x32xf32> to vector<8xf32>
      %19 = vector.shape_cast %18 : vector<8xf32> to vector<8x1xf32>
      %cst_13 = arith.constant 3.200000e+01 : f32
      %20 = vector.broadcast %cst_13 : f32 to vector<8x1xf32>
      %21 = arith.divf %19, %20 : vector<8x1xf32>
      %cst_14 = arith.constant 9.99999974E-6 : f32
      %22 = vector.broadcast %cst_14 : f32 to vector<8x1xf32>
      %23 = arith.addf %21, %22 : vector<8x1xf32>
      %24 = math.rsqrt %23 : vector<8x1xf32>
      %25 = vector.broadcast %24 : vector<8x1xf32> to vector<8x32xf32>
      %26 = arith.mulf %16, %25 : vector<8x32xf32>
      %c0_15 = arith.constant 0 : index
      %c0_16 = arith.constant 0 : index
      %27 = vector.load %arg3[%c0_15, %c0_16] : memref<1x32xf32, #tpu.memory_space<vmem>>, vector<1x32xf32>
      %28 = vector.broadcast %27 : vector<1x32xf32> to vector<8x32xf32>
      %29 = arith.mulf %26, %28 : vector<8x32xf32>
      %c0_17 = arith.constant 0 : index
      %c0_18 = arith.constant 0 : index
      %30 = vector.load %arg4[%c0_17, %c0_18] : memref<1x32xf32, #tpu.memory_space<vmem>>, vector<1x32xf32>
      %31 = vector.broadcast %30 : vector<1x32xf32> to vector<8x32xf32>
      %32 = arith.addf %29, %31 : vector<8x32xf32>
      %c0_19 = arith.constant 0 : index
      %c0_20 = arith.constant 0 : index
      %33 = vector.load %arg8[%c0_19, %c0_20] : memref<8x32xf32, #tpu.memory_space<vmem>>, vector<8x32xf32>
      tpu.vector_store %arg8[%c0_19, %c0_20], %32 {strides = array<i32>} : memref<8x32xf32, #tpu.memory_space<vmem>>, vector<8x32xf32>,
    } else {
    }
    %c0 = arith.constant 0 : index
    %c0_1 = arith.constant 0 : index
    %3 = vector.load %arg8[%c0, %c0_1] : memref<8x32xf32, #tpu.memory_space<vmem>>, vector<8x32xf32>
    %c0_2 = arith.constant 0 : index
    %c0_3 = arith.constant 0 : index
    %4 = vector.load %arg5[%c0_2, %c0_3] : memref<32x32xf32, #tpu.memory_space<vmem>>, vector<32x32xf32>
    %cst = arith.constant dense<0.000000e+00> : vector<8x32xf32>
    %5 = tpu.matmul %3, %4, %cst {dimension_numbers = #tpu.dot_dimension_numbers<[1], [0], [0], [1], [0, 0, 1, 1], [], []>} : vector<8x32xf32>, vector<32x32xf32>, vector<8x32xf32> -> vector<8x32xf32>
    %c0_4 = arith.constant 0 : index
    %c0_5 = arith.constant 0 : index
    %6 = vector.load %arg6[%c0_4, %c0_5] : memref<1x32xf32, #tpu.memory_space<vmem>>, vector<1x32xf32>
    %7 = vector.broadcast %6 : vector<1x32xf32> to vector<8x32xf32>
    %8 = arith.addf %5, %7 : vector<8x32xf32>
    %c0_6 = arith.constant 0 : index
    %c0_7 = arith.constant 0 : index
    %9 = vector.load %arg7[%c0_6, %c0_7] : memref<8x32xf32, #tpu.memory_space<vmem>>, vector<8x32xf32>
    tpu.vector_store %arg7[%c0_6, %c0_7], %8 {strides = array<i32>} : memref<8x32xf32, #tpu.memory_space<vmem>>, vector<8x32xf32>,
    return
  }
  func.func @transform_0(%arg0: i32, %arg1: i32) -> (i32, i32) {
    %c0_i32 = arith.constant 0 : i32
    %c0_i32_0 = arith.constant 0 : i32
    return %arg0, %c0_i32 : i32, i32
  }
  func.func @transform_1(%arg0: i32, %arg1: i32) -> (i32, i32) {
    %c0_i32 = arith.constant 0 : i32
    %c0_i32_0 = arith.constant 0 : i32
    %c0_i32_1 = arith.constant 0 : i32
    return %c0_i32, %c0_i32_0 : i32, i32
  }
  func.func @transform_2(%arg0: i32, %arg1: i32) -> (i32, i32) {
    %c0_i32 = arith.constant 0 : i32
    %c0_i32_0 = arith.constant 0 : i32
    %c0_i32_1 = arith.constant 0 : i32
    return %c0_i32, %c0_i32_0 : i32, i32
  }
  func.func @transform_3(%arg0: i32, %arg1: i32) -> (i32, i32) {
    %c0_i32 = arith.constant 0 : i32
    %c0_i32_0 = arith.constant 0 : i32
    return %c0_i32, %arg1 : i32, i32
  }
  func.func @transform_4(%arg0: i32, %arg1: i32) -> (i32, i32) {
    %c0_i32 = arith.constant 0 : i32
    %c0_i32_0 = arith.constant 0 : i32
    return %c0_i32, %arg1 : i32, i32
  }
  func.func @transform_5(%arg0: i32, %arg1: i32) -> (i32, i32) {
    %c0_i32 = arith.constant 0 : i32
    return %arg0, %arg1 : i32, i32
  }
}

</mosaic_0001>

<llo_original>
// kernel: tpu_custom_call.1
$region0: #{tpu_custom_call.1}
  #allocation0 [shape = 'u32[]', space=smem, size = 0x4, offset = 0x4, fixed_abs, tag = 'smem constant byte address 0x4 - core index']
  #allocation1 [shape = 'u32[72,128]{1,0:T(1,128)}', space=vmem, size = 0x9000, scoped, tag = 'internal scratch']
  #allocation2 [shape = 'f32[8,32]{1,0:T(8,128)}', space=vmem, size = 0x1000, scoped, tag = 'scratch operand']
  %s0 = inlined_call_operand.hbm [shape: f32[16,32], index: 0, kind: input, shape index: {}]
  %s1 = inlined_call_operand.hbm [shape: f32[1,32], index: 1, kind: input, shape index: {}]
  %s2 = inlined_call_operand.vmem [shape: f32[1,32], index: 2, kind: input, shape index: {}]
  %s3 = inlined_call_operand.hbm [shape: f32[32,32], index: 3, kind: input, shape index: {}]
  %s4 = inlined_call_operand.vmem [shape: f32[1,32], index: 4, kind: input, shape index: {}]
  %s5 = inlined_call_operand.hbm [shape: f32[16,32], index: 5, kind: output, shape index: {}]
  %s6 = sld [smem:[#allocation0]]
  $region69: #{tpu_custom_call.1} parent=0
    _
  %s8 = ssub.s32 1, %s6
  %s9 = scalar_select 0, %s8, %s6
  $region1: #{tpu_custom_call.1} parent=0
    #allocation3 [shape = 'u8[8192]{0}', space=vmem, size = 0x2000, scoped, tag = 'input window, operand 0']
    #allocation4 [shape = 's32[2]{0}', space=sflag, size = 0x8, scoped, tag = 'scoped memory for tpu_custom_call.1']
    #allocation5 [shape = 's32[2]{0}', space=sflag, size = 0x8, scoped, tag = 'scoped memory for tpu_custom_call.1']
    #allocation6 [shape = 'u8[512]{0}', space=vmem, size = 0x400, scoped, tag = 'input window, operand 1, single buffered']
    #allocation7 [shape = 's32[1]{0}', space=sflag, size = 0x4, scoped, tag = 'scoped memory for tpu_custom_call.1']
    #allocation8 [shape = 'u8[16384]{0}', space=vmem, size = 0x4000, scoped, tag = 'input window, operand 3, single buffered']
    #allocation9 [shape = 'u8[8192]{0}', space=vmem, size = 0x2000, scoped, tag = 'output window, operand 0']
    %10 = vsyncpa [#allocation4], 0
    %s11 = scalar_lea.sflag [#allocation4], 1
    %12 = vsyncpa %s11, 0
    %13 = vsyncpa [#allocation7], 0
    %14 = vsyncpa [#allocation5], 0
    %s15 = scalar_lea.sflag [#allocation5], 1
    %16 = vsyncpa %s15, 0
    loop: start=0, step=1, limit=4
    $region2: #{tpu_custom_call.1} parent=1 // loop_pre_header
      _
    $region3: #{tpu_custom_call.1} parent=1 // loop_header
      %s18 = sphi 0, %s22
      %p19 = scmp.ge.s32.totalorder %s18, 4
      %s25 = sphi 0, %s37
      %s26 = sphi 0, %s33
      %s27 = sphi 0, %s25
      %s28 = sphi 0, %s26
      %s29 = sphi 0, %s27
      %s30 = sphi 0, %s28
      %s40 = sphi 0, %s42
      %s43 = sphi 0, %s40
      %s44 = sphi 0, %s43
      %s60 = sphi 0, %s44
      %s64 = sphi 0, %s64
      %s66 = sphi 0, %s64
      %s67 = sphi 0, %s66
      %s81 = sphi 0, %s67
      %s85 = sphi 0, %s85
      %s87 = sphi 0, %s85
      %s88 = sphi 0, %s87
      %s102 = sphi 0, %s88
      %s108 = sphi 0, %s110
      %s111 = sphi 0, %s108
      %s112 = sphi 0, %s111
      %s128 = sphi 0, %s112
      %s134 = sphi 0, %s136
      %s137 = sphi 0, %s134
      %s138 = sphi 0, %s137
      %s154 = sphi 0, %s138
      %s162 = sphi 0, %s164
      %s165 = sphi 0, %s162
      %s166 = sphi 0, %s165
      %s182 = sphi 0, %s166
    $region4: #{tpu_custom_call.1} parent=1 // loop_header_branch
      %21 = sbr.rel (%p19) target = $region8
    $region5: #{tpu_custom_call.1} parent=1 // loop_body
      %s23 = ssub.s32 %s18, 1
      %s24 = ssub.s32 %s18, 2
      %s31 = sadd.s32 1, %s26
      %p32 = scmp.ge.s32.totalorder %s31, 1
      %s33 = scalar_select %p32, 0, %s31
      %s34 = sadd.s32 1, %s25
      %s35 = scalar_select %p32, %s34, %s25
      %p36 = scmp.ge.s32.totalorder %s35, 2
      %s37 = scalar_select %p36, 0, %s35
      %s38 = ssub.s32 %s25, %s37
      %p39 = scmp.eq.s32.totalorder %s38, 0
      %s41 = sadd.s32 %s40, 1
      %s42 = scalar_select %p39, %s40, %s41
      %p45 = pneg %p39
      %p46 = scmp.eq.s32.totalorder %s18, 1
      %p47 = por %p45, %p46
      %p48 = scmp.ne.s32.totalorder %s40, %s43
      %p49 = scmp.eq.s32.totalorder %s18, 0
      %p50 = por %p48, %p49
      %p51 = scmp.ne.s32.totalorder %s40, %s43
      %p52 = scmp.eq.s32.totalorder %s23, 1
      %p53 = por %p51, %p52
      %p54 = scmp.ne.s32.totalorder %s43, %s44
      %p55 = scmp.eq.s32.totalorder %s23, 0
      %p56 = por %p54, %p55
      %p57 = scmp.ne.s32.totalorder %s43, %s44
      %p58 = scmp.eq.s32.totalorder %s24, 1
      %p59 = por %p57, %p58
      %p61 = scmp.ne.s32.totalorder %s44, %s60
      %p62 = scmp.eq.s32.totalorder %s24, 0
      %p63 = por %p61, %p62
      %s65 = sadd.s32 %s64, 1
      %p68 = scmp.eq.s32.totalorder %s18, 1
      %p69 = scmp.ne.s32.totalorder %s64, %s66
      %p70 = scmp.eq.s32.totalorder %s18, 0
      %p71 = por %p69, %p70
      %p72 = scmp.ne.s32.totalorder %s64, %s66
      %p73 = scmp.eq.s32.totalorder %s23, 1
      %p74 = por %p72, %p73
      %p75 = scmp.ne.s32.totalorder %s66, %s67
      %p76 = scmp.eq.s32.totalorder %s23, 0
      %p77 = por %p75, %p76
      %p78 = scmp.ne.s32.totalorder %s66, %s67
      %p79 = scmp.eq.s32.totalorder %s24, 1
      %p80 = por %p78, %p79
      %p82 = scmp.ne.s32.totalorder %s67, %s81
      %p83 = scmp.eq.s32.totalorder %s24, 0
      %p84 = por %p82, %p83
      %s86 = sadd.s32 %s85, 1
      %p89 = scmp.eq.s32.totalorder %s18, 1
      %p90 = scmp.ne.s32.totalorder %s85, %s87
      %p91 = scmp.eq.s32.totalorder %s18, 0
      %p92 = por %p90, %p91
      %p93 = scmp.ne.s32.totalorder %s85, %s87
      %p94 = scmp.eq.s32.totalorder %s23, 1
      %p95 = por %p93, %p94
      %p96 = scmp.ne.s32.totalorder %s87, %s88
      %p97 = scmp.eq.s32.totalorder %s23, 0
      %p98 = por %p96, %p97
      %p99 = scmp.ne.s32.totalorder %s87, %s88
      %p100 = scmp.eq.s32.totalorder %s24, 1
      %p101 = por %p99, %p100
      %p103 = scmp.ne.s32.totalorder %s88, %s102
      %p104 = scmp.eq.s32.totalorder %s24, 0
      %p105 = por %p103, %p104
      %s106 = ssub.s32 %s26, %s33
      %p107 = scmp.eq.s32.totalorder %s106, 0
      %s109 = sadd.s32 %s108, 1
      %s110 = scalar_select %p107, %s108, %s109
      %p113 = pneg %p107
      %p114 = scmp.eq.s32.totalorder %s18, 1
      %p115 = por %p113, %p114
      %p116 = scmp.ne.s32.totalorder %s108, %s111
      %p117 = scmp.eq.s32.totalorder %s18, 0
      %p118 = por %p116, %p117
      %p119 = scmp.ne.s32.totalorder %s108, %s111
      %p120 = scmp.eq.s32.totalorder %s23, 1
      %p121 = por %p119, %p120
      %p122 = scmp.ne.s32.totalorder %s111, %s112
      %p123 = scmp.eq.s32.totalorder %s23, 0
      %p124 = por %p122, %p123
      %p125 = scmp.ne.s32.totalorder %s111, %s112
      %p126 = scmp.eq.s32.totalorder %s24, 1
      %p127 = por %p125, %p126
      %p129 = scmp.ne.s32.totalorder %s112, %s128
      %p130 = scmp.eq.s32.totalorder %s24, 0
      %p131 = por %p129, %p130
      %s132 = ssub.s32 %s26, %s33
      %p133 = scmp.eq.s32.totalorder %s132, 0
      %s135 = sadd.s32 %s134, 1
      %s136 = scalar_select %p133, %s134, %s135
      %p139 = pneg %p133
      %p140 = scmp.eq.s32.totalorder %s18, 1
      %p141 = por %p139, %p140
      %p142 = scmp.ne.s32.totalorder %s134, %s137
      %p143 = scmp.eq.s32.totalorder %s18, 0
      %p144 = por %p142, %p143
      %p145 = scmp.ne.s32.totalorder %s134, %s137
      %p146 = scmp.eq.s32.totalorder %s23, 1
      %p147 = por %p145, %p146
      %p148 = scmp.ne.s32.totalorder %s137, %s138
      %p149 = scmp.eq.s32.totalorder %s23, 0
      %p150 = por %p148, %p149
      %p151 = scmp.ne.s32.totalorder %s137, %s138
      %p152 = scmp.eq.s32.totalorder %s24, 1
      %p153 = por %p151, %p152
      %p155 = scmp.ne.s32.totalorder %s138, %s154
      %p156 = scmp.eq.s32.totalorder %s24, 0
      %p157 = por %p155, %p156
      %s158 = ssub.s32 %s25, %s37
      %s159 = ssub.s32 %s26, %s33
      %s160 = sor.u32 %s158, %s159
      %p161 = scmp.eq.s32.totalorder %s160, 0
      %s163 = sadd.s32 %s162, 1
      %s164 = scalar_select %p161, %s162, %s163
      %p167 = pneg %p161
      %p168 = scmp.eq.s32.totalorder %s18, 1
      %p169 = por %p167, %p168
      %p170 = scmp.ne.s32.totalorder %s162, %s165
      %p171 = scmp.eq.s32.totalorder %s18, 0
      %p172 = por %p170, %p171
      %p173 = scmp.ne.s32.totalorder %s162, %s165
      %p174 = scmp.eq.s32.totalorder %s23, 1
      %p175 = por %p173, %p174
      %p176 = scmp.ne.s32.totalorder %s165, %s166
      %p177 = scmp.eq.s32.totalorder %s23, 0
      %p178 = por %p176, %p177
      %p179 = scmp.ne.s32.totalorder %s165, %s166
      %p180 = scmp.eq.s32.totalorder %s24, 1
      %p181 = por %p179, %p180
      %p183 = scmp.ne.s32.totalorder %s166, %s182
      %p184 = scmp.eq.s32.totalorder %s24, 0
      %p185 = por %p183, %p184
      %p186 = scmp.le.s32.totalorder 1, %s18
      %p187 = scmp.lt.s32.totalorder %s18, 3
      %p188 = pnand %p186, %p187
      %p189 = pneg %p188
      // Predicated region
      $region9: #{tpu_custom_call.1} parent=5 // pred_check
        _
      $region10: #{tpu_custom_call.1} parent=5 // pred_check_branch
        %191 = sbr.rel (%p188) target = $region12
      $region11: #{tpu_custom_call.1} parent=5 // pred_region
        %s192 = ssub.s32 %s18, 1
        // Predicated region
        $region13: #{tpu_custom_call.1} parent=11 // pred_check
          %p193 = pneg %p77
        $region14: #{tpu_custom_call.1} parent=11 // pred_check_branch
          %195 = sbr.rel (%p193) target = $region16
        $region15: #{tpu_custom_call.1} parent=11 // pred_region
          %197 = vsyncadd [#allocation7], 0
          %s199 = sshll.u32 %s1, 4
          %s200 = int_to_ptr.hbm [resolvable:$true] %s199
          %s201 = sshll.u32 [#allocation6], 4
          %s202 = int_to_ptr.vmem [resolvable:$true] %s201
          %204 = dma.hbm_to_vmem [thread:$0]  %s200, 16, %s202, [#allocation7]
        $region16: #{tpu_custom_call.1} parent=11 // pred_fallthru
          _
        // Predicated region
        $region17: #{tpu_custom_call.1} parent=11 // pred_check
          %p205 = pneg %p98
        $region18: #{tpu_custom_call.1} parent=11 // pred_check_branch
          %207 = sbr.rel (%p205) target = $region20
        $region19: #{tpu_custom_call.1} parent=11 // pred_region
          _
        $region20: #{tpu_custom_call.1} parent=11 // pred_fallthru
          _
        // Predicated region
        $region21: #{tpu_custom_call.1} parent=11 // pred_check
          %p208 = pneg %p124
        $region22: #{tpu_custom_call.1} parent=11 // pred_check_branch
          %210 = sbr.rel (%p208) target = $region24
        $region23: #{tpu_custom_call.1} parent=11 // pred_region
          %212 = vsyncadd [#allocation7], 0
          %s213 = smul.addr %s28, 8
          %s214 = scalar_lea.hbm %s3, %s213
          %s215 = sshll.u32 %s214, 4
          %s216 = int_to_ptr.hbm [resolvable:$true] %s215
          %s217 = sshll.u32 [#allocation8], 4
          %s218 = int_to_ptr.vmem [resolvable:$true] %s217
          %223 = dma.hbm_to_vmem [thread:$0]  %s216, 512, %s218, [#allocation7], 128, 128, 8
        $region24: #{tpu_custom_call.1} parent=11 // pred_fallthru
          _
        // Predicated region
        $region25: #{tpu_custom_call.1} parent=11 // pred_check
          %p224 = pneg %p150
        $region26: #{tpu_custom_call.1} parent=11 // pred_check_branch
          %226 = sbr.rel (%p224) target = $region28
        $region27: #{tpu_custom_call.1} parent=11 // pred_region
          %p227 = scmp.lt.s32.totalorder %s28, 0
          %s228 = scalar_select %p227, %s28, 0
          %s229 = scalar_lea.vmem %s4, %s228
        $region28: #{tpu_custom_call.1} parent=11 // pred_fallthru
          _
      $region12: #{tpu_custom_call.1} parent=5 // pred_fallthru
        _
      %p230 = scmp.lt.s32.totalorder %s18, 2
      // Predicated region
      $region29: #{tpu_custom_call.1} parent=5 // pred_check
        %p231 = pneg %p230
      $region30: #{tpu_custom_call.1} parent=5 // pred_check_branch
        %233 = sbr.rel (%p231) target = $region32
      $region31: #{tpu_custom_call.1} parent=5 // pred_region
        // Predicated region
        $region33: #{tpu_custom_call.1} parent=31 // pred_check
          %p234 = pneg %p50
        $region34: #{tpu_custom_call.1} parent=31 // pred_check_branch
          %236 = sbr.rel (%p234) target = $region36
        $region35: #{tpu_custom_call.1} parent=31 // pred_region
          %s237 = sand.u32 %s40, 1
          %s238 = scalar_lea.sflag [#allocation4], %s237
          %s239 = sand.u32 %s40, 1
          %s240 = smul.addr %s239, 8
          %s241 = scalar_lea.vmem [#allocation3], %s240
          %243 = vsyncadd %s238, 0
          %s244 = smul.addr %s25, 8
          %s245 = scalar_lea.hbm %s0, %s244
          %s247 = sshll.u32 %s245, 4
          %s248 = int_to_ptr.hbm [resolvable:$true] %s247
          %s249 = sshll.u32 %s241, 4
          %s250 = int_to_ptr.vmem [resolvable:$true] %s249
          %252 = dma.hbm_to_vmem [thread:$0]  %s248, 128, %s250, %s238
        $region36: #{tpu_custom_call.1} parent=31 // pred_fallthru
          _
      $region32: #{tpu_custom_call.1} parent=5 // pred_fallthru
        _
      %p253 = scmp.le.s32.totalorder 1, %s18
      %p254 = scmp.lt.s32.totalorder %s18, 3
      %p255 = pnand %p253, %p254
      %p256 = pneg %p255
      // Predicated region
      $region37: #{tpu_custom_call.1} parent=5 // pred_check
        _
      $region38: #{tpu_custom_call.1} parent=5 // pred_check_branch
        %258 = sbr.rel (%p255) target = $region40
      $region39: #{tpu_custom_call.1} parent=5 // pred_region
        %s259 = ssub.s32 %s18, 1
        %s260 = sand.u32 %s43, 1
        %s261 = scalar_lea.sflag [#allocation4], %s260
        %s262 = sand.u32 %s43, 1
        %s263 = smul.addr %s262, 8
        %s264 = scalar_lea.vmem [#allocation3], %s263
        // Predicated region
        $region41: #{tpu_custom_call.1} parent=39 // pred_check
          %p265 = pneg %p56
        $region42: #{tpu_custom_call.1} parent=39 // pred_check_branch
          %267 = sbr.rel (%p265) target = $region44
        $region43: #{tpu_custom_call.1} parent=39 // pred_region
          %269 = dma.done %s261, 128
        $region44: #{tpu_custom_call.1} parent=39 // pred_fallthru
          _
        // Predicated region
        $region45: #{tpu_custom_call.1} parent=39 // pred_check
          %p270 = pneg %p77
        $region46: #{tpu_custom_call.1} parent=39 // pred_check_branch
          %272 = sbr.rel (%p270) target = $region48
        $region47: #{tpu_custom_call.1} parent=39 // pred_region
          %274 = dma.done [#allocation7], 16
        $region48: #{tpu_custom_call.1} parent=39 // pred_fallthru
          _
        // Predicated region
        $region49: #{tpu_custom_call.1} parent=39 // pred_check
          %p275 = pneg %p124
        $region50: #{tpu_custom_call.1} parent=39 // pred_check_branch
          %277 = sbr.rel (%p275) target = $region52
        $region51: #{tpu_custom_call.1} parent=39 // pred_region
          %279 = dma.done [#allocation7], 512
        $region52: #{tpu_custom_call.1} parent=39 // pred_fallthru
          _
        %s280 = sand.u32 %s43, 1
        %s281 = scalar_lea.sflag [#allocation4], %s280
        %s282 = sand.u32 %s43, 1
        %s283 = smul.addr %s282, 8
        %s284 = scalar_lea.vmem [#allocation3], %s283
        %p285 = pneg %p56
        %p286 = pneg %p53
        %p287 = pneg %p77
        %p288 = pneg %p74
        %p289 = pneg %p98
        %p290 = pneg %p95
        %p291 = pneg %p124
        %p292 = pneg %p121
        %p293 = scmp.lt.s32.totalorder %s28, 0
        %s294 = scalar_select %p293, %s28, 0
        %s295 = scalar_lea.vmem %s4, %s294
        %p296 = pneg %p150
        %p297 = pneg %p147
        %p298 = pneg %p178
        %p299 = pneg %p175
        %s300 = sand.u32 %s165, 1
        %s301 = scalar_lea.sflag [#allocation5], %s300
        %s302 = sand.u32 %s165, 1
        %s303 = smul.addr %s302, 8
        %s304 = scalar_lea.vmem [#allocation9], %s303
        %p305 = scmp.lt.s32.totalorder %s28, 0
        %s306 = scalar_select %p305, %s28, 0
        %s307 = scalar_lea.vmem %s4, %s306
        %p308 = scmp.eq.s32.totalorder %s28, 0
        // Predicated region
        $region53: #{tpu_custom_call.1} parent=39 // pred_check
          %p309 = pneg %p308
        $region54: #{tpu_custom_call.1} parent=39 // pred_check_branch
          %311 = sbr.rel (%p309) target = $region56
        $region55: #{tpu_custom_call.1} parent=39 // pred_region
          %v312 = vld [vmem:[%s264] sm:$0xff]
          %vm313 = vcmask 261120
          %v314 = vsel %vm313, %v312, 0.0
          %315 = vadd.xlane.f32.xlu0 %v314
          %v316 = vpop.xlane.xlu0 %315
          %v317 = vrcp.pop 32.0
          %v318 = vmul.f32 32.0, %v317
          %v319 = vsub.f32 1.0, %v318
          %v320 = vmul.f32 %v317, %v319
          %v321 = vadd.f32 %v317, %v320
          %vm322 = vweird.f32 %v317
          %v323 = vsel %vm322, %v317, %v321
          %v324 = vmul.f32 %v316, %v323
          %v325 = vsub.f32 %v312, %v324
          %v326 = vmul.f32 %v325, %v325
          %v327 = vsel %vm313, %v326, 0.0
          %328 = vadd.xlane.f32.xlu0 %v327
          %v329 = vpop.xlane.xlu0 %328
          %v330 = vmul.f32 %v329, %v323
          %v331 = vadd.f32 %v330, 1e-05
          %v332 = vrsqrt.pop %v331
          %v333 = vmul.f32 %v332, %v331
          %v334 = vmul.f32 %v333, %v332
          %v335 = vmul.f32 0.5, %v334
          %v336 = vsub.f32 1.5, %v335
          %v337 = vmul.f32 %v332, %v336
          %vm338 = vweird.f32 %v331
          %vm339 = vweird.f32 %v332
          %vm340 = vmor %vm338, %vm339
          %v341 = vsel %vm340, %v332, %v337
          %v342 = vmul.f32 %v325, %v341
          %v343 = vld [vmem:[#allocation6] sm:$0x1]
          %v345 = vperm.slane %v343, 0
          %v347 = vmul.f32 %v342, %v345
          %v348 = vld [vmem:[%s2] sm:$0x1]
          %v350 = vperm.slane %v348, 0
          %v352 = vadd.f32 %v347, %v350
          %353 = vst.msk [vmem:[#allocation2] sm:$0xff] %vm313, %v352
        $region56: #{tpu_custom_call.1} parent=39 // pred_fallthru
          _
        %v354 = vld [vmem:[#allocation2] sm:$0xff]
        %v355 = vld [vmem:[#allocation8] sm:$0xff]
        %v356 = vld [vmem:[#allocation8 + $0x8] sm:$0xff]
        %v357 = vld [vmem:[#allocation8 + $0x10] sm:$0xff]
        %v358 = vld [vmem:[#allocation8 + $0x18] sm:$0xff]
        %v359 = vld [vmem:[%s307] sm:$0x1]
        %v361 = vperm.slane %v359, 0
        %vm363 = vcmask 261120
        %v365 = vsel %vm363, %v354, 0
        %367 = vmatpush.msra.mxu0 0.0
        %368 = vmatpush.msra.mxu0 0.0
        %369 = vmatpush.msra.mxu0 0.0
        %370 = vmatpush.msra.mxu0 0.0
        %371 = vmatpush.msra.mxu0 0.0
        %372 = vmatpush.msra.mxu0 0.0
        %373 = vmatpush.msra.mxu0 0.0
        %374 = vmatpush.msra.mxu0 0.0
        %375 = vmatpush.msra.mxu0 0.0
        %376 = vmatpush.msra.mxu0 0.0
        %377 = vmatpush.msra.mxu0 0.0
        %378 = vmatpush.msra.mxu0 0.0
        %379 = vmatpush.msra.mxu0 %v358
        %380 = vmatpush.msra.mxu0 %v357
        %381 = vmatpush.msra.mxu0 %v356
        %382 = vmatpush.msra.mxu0 %v355
        %383 = vmatmul.f32.gmra.mxu0 %v365
        %v384 = vpop.f32.mrf.mxu0
        %v385 = vadd.f32 %v361, %v384
        %386 = vdwg.mxu0
        %387 = vst.msk [vmem:[%s304] sm:$0xff] %vm363, %v385
        %s388 = sand.u32 %s165, 1
        %s389 = scalar_lea.sflag [#allocation5], %s388
        %s390 = sand.u32 %s165, 1
        %s391 = smul.addr %s390, 8
        %s392 = scalar_lea.vmem [#allocation9], %s391
        // Predicated region
        $region57: #{tpu_custom_call.1} parent=39 // pred_check
          %p393 = pneg %p175
        $region58: #{tpu_custom_call.1} parent=39 // pred_check_branch
          %395 = sbr.rel (%p393) target = $region60
        $region59: #{tpu_custom_call.1} parent=39 // pred_region
          %397 = vsyncadd %s389, 0
          %s398 = sadd.s32 %s28, %s27
          %s399 = smul.addr %s398, 8
          %s400 = scalar_lea.hbm %s5, %s399
          %s402 = sshll.u32 %s392, 4
          %s403 = int_to_ptr.vmem [resolvable:$true] %s402
          %s404 = sshll.u32 %s400, 4
          %s405 = int_to_ptr.hbm [resolvable:$true] %s404
          %407 = dma.vmem_to_hbm [thread:$0]  %s403, 128, %s405, %s389
        $region60: #{tpu_custom_call.1} parent=39 // pred_fallthru
          _
      $region40: #{tpu_custom_call.1} parent=5 // pred_fallthru
        _
      %p408 = scmp.le.s32.totalorder 2, %s18
      // Predicated region
      $region61: #{tpu_custom_call.1} parent=5 // pred_check
        %p409 = pneg %p408
      $region62: #{tpu_custom_call.1} parent=5 // pred_check_branch
        %411 = sbr.rel (%p409) target = $region64
      $region63: #{tpu_custom_call.1} parent=5 // pred_region
        %s412 = ssub.s32 %s18, 2
        // Predicated region
        $region65: #{tpu_custom_call.1} parent=63 // pred_check
          %p413 = pneg %p181
        $region66: #{tpu_custom_call.1} parent=63 // pred_check_branch
          %415 = sbr.rel (%p413) target = $region68
        $region67: #{tpu_custom_call.1} parent=63 // pred_region
          %s416 = sand.u32 %s166, 1
          %s417 = scalar_lea.sflag [#allocation5], %s416
          %s418 = sand.u32 %s166, 1
          %s419 = smul.addr %s418, 8
          %s420 = scalar_lea.vmem [#allocation9], %s419
          %422 = dma.done %s417, 128
        $region68: #{tpu_custom_call.1} parent=63 // pred_fallthru
          _
      $region64: #{tpu_custom_call.1} parent=5 // pred_fallthru
        _
    $region6: #{tpu_custom_call.1} parent=1 // loop_footer
      %s22 = sadd.s32 1, %s18
    $region7: #{tpu_custom_call.1} parent=1 // loop_footer_branch
      %17 = sbr.rel target = $region3
    $region8: #{tpu_custom_call.1} parent=1 // loop_exit
      _
    %423 = vsyncpa [#allocation4], 1
    %s424 = scalar_lea.sflag [#allocation4], 1
    %425 = vsyncpa %s424, 1
    %426 = vsyncpa [#allocation7], 1
    %427 = vsyncpa [#allocation5], 1
    %s428 = scalar_lea.sflag [#allocation5], 1
    %429 = vsyncpa %s428, 1

</llo_original>
